<compile_context>
chip_gen: v7x
topology: tpu7x:2x2x1
jax: 0.10.0
libtpu: 0.0.40
codegen_flags: <defaults>
</compile_context>

<pallas_src>
import functools

import jax
import jax.numpy as jnp
from jax.experimental import pallas as pl
from jax.experimental.pallas import tpu as pltpu


def _round_up(x: int, m: int) -> int:
    return ((x + m - 1) // m) * m


def _vmem_budgets():
    """Return (input double-buffer byte budget, scoped vmem_limit_bytes)."""
    try:
        vmem_cap = int(pltpu.get_tpu_info().vmem_capacity_bytes)
    except Exception:
        vmem_cap = 64 * 1024 * 1024  # conservative: assume v7x-style 64 MiB/TC
    if vmem_cap >= 100 * 1024 * 1024:
        # v5e / v6e: 128 MiB physical VMEM -> big tiles, fewer grid steps.
        return 48 * 1024 * 1024, 64 * 1024 * 1024
    # v7x: 64 MiB per TensorCore -> leave headroom for outputs / scratch.
    return 20 * 1024 * 1024, 48 * 1024 * 1024


def _make_kernel(margin_pos: float, margin_neg: float, batch: int, tile_b: int):
    """All closed-over values are Python scalars -> jaxpr literals."""

    def kernel(a_ref, p_ref, ntl_ref, neg_ref, out_ref):
        # Load tiles in native dtype; upcast in-register to f32 for accumulation.
        a = a_ref[...].astype(jnp.float32)
        p = p_ref[...].astype(jnp.float32)
        ntl = ntl_ref[...].astype(jnp.float32)
        neg = neg_ref[...].astype(jnp.float32)

        # sim_an - sim_ap == <a, ntl - p>; sim_ane - sim_an == <a, neg - ntl>.
        # (Inputs assumed L2-normalized, matching the PyTorch module.)
        sim1 = jnp.sum(a * (ntl - p), axis=1, keepdims=True)   # (tile_b, 1)
        sim2 = jnp.sum(a * (neg - ntl), axis=1, keepdims=True)  # (tile_b, 1)

        loss = jnp.maximum(sim1 + margin_pos, 0.0) + jnp.maximum(
            sim2 + margin_neg, 0.0
        )  # (tile_b, 1)

        # Mask ragged rows of the last tile (their VMEM contents are
        # unspecified); must happen before the block reduction.
        row = pl.program_id(0) * tile_b + jax.lax.broadcasted_iota(
            jnp.int32, (tile_b, 1), 0
        )
        loss = jnp.where(row < batch, loss, 0.0)

        # Lane-dense store of the per-block partial sum.
        out_ref[...] = jnp.sum(loss) * jnp.ones((1, 128), jnp.float32)

    return kernel


@functools.partial(jax.jit, static_argnames=("margin_pos", "margin_neg"))
def ordinal_triplet_loss_cosine(anchor, positive, neutral, negative,
                                margin_pos: float = 0.1,
                                margin_neg: float = 0.1):
    assert anchor.shape == positive.shape == neutral.shape == negative.shape
    batch, dim = anchor.shape
    dtype_bytes = jnp.dtype(anchor.dtype).itemsize

    budget, vmem_limit = _vmem_budgets()

    # Tile rows: 4 inputs x 2 pipeline buffers x tile_b x dim x bytes <= budget.
    # Multiple of 8, no artificial row cap (bytes-per-step drives sizing),
    # clamped to the batch.
    per_row = 4 * 2 * dim * dtype_bytes
    tile_b = (budget // per_row) // 8 * 8
    tile_b = max(8, tile_b)
    tile_b = min(tile_b, _round_up(batch, 8))

    # Megacore (v7x has 2 TCs): keep at least 2 grid steps when batch allows.
    if batch >= 16:
        tile_b = min(tile_b, _round_up(pl.cdiv(batch, 2), 8))

    num_blocks = int(pl.cdiv(batch, tile_b))

    kernel = _make_kernel(float(margin_pos), float(margin_neg),
                          int(batch), int(tile_b))

    # Last block dim equals the full array dim (legal for any dim); no padding,
    # no extra HBM round-trip.
    in_spec = pl.BlockSpec((tile_b, dim), lambda i: (i, 0))

    partials = pl.pallas_call(
        kernel,
        out_shape=jax.ShapeDtypeStruct((num_blocks, 128), jnp.float32),
        grid=(num_blocks,),
        in_specs=[in_spec, in_spec, in_spec, in_spec],
        out_specs=pl.BlockSpec((1, 128), lambda i: (i, 0)),
        compiler_params=pltpu.CompilerParams(
            dimension_semantics=("parallel",),
            vmem_limit_bytes=vmem_limit,
        ),
    )(anchor, positive, neutral, negative)

    # One cheap XLA reduction over the per-block partials, then the batch mean.
    return jnp.sum(partials[:, 0]) / batch


def _reference(anchor, positive, neutral, negative, m_pos=0.1, m_neg=0.1):
    sim_ap = jnp.sum(anchor * positive, axis=1)
    sim_an = jnp.sum(anchor * neutral, axis=1)
    sim_ane = jnp.sum(anchor * negative, axis=1)
    l1 = jnp.maximum(sim_an - sim_ap + m_pos, 0.0)
    l2 = jnp.maximum(sim_ane - sim_an + m_neg, 0.0)
    return jnp.mean(l1 + l2)


if __name__ == "__main__":
    key = jax.random.PRNGKey(0)
    batch, dim = 8, 32

    k1, k2, k3, k4 = jax.random.split(key, 4)

    def l2norm(x):
        return x / jnp.linalg.norm(x, axis=1, keepdims=True)

    anchor = l2norm(jax.random.normal(k1, (batch, dim), dtype=jnp.float32))
    positive = l2norm(jax.random.normal(k2, (batch, dim), dtype=jnp.float32))
    neutral = l2norm(jax.random.normal(k3, (batch, dim), dtype=jnp.float32))
    negative = l2norm(jax.random.normal(k4, (batch, dim), dtype=jnp.float32))

    loss = ordinal_triplet_loss_cosine(anchor, positive, neutral, negative)
    loss = jax.block_until_ready(loss)

    ref = _reference(anchor, positive, neutral, negative)
    assert jnp.allclose(loss, ref, atol=1e-5, rtol=1e-5), (loss, ref)

    print("KERNEL_OK")
</pallas_src>

<mosaic_0001>
module attributes {stable_mosaic.version = 11 : i64} {
  func.func @kernel(%arg0: i32, %arg1: memref<8x32xf32, #tpu.memory_space<vmem>>, %arg2: memref<8x32xf32, #tpu.memory_space<vmem>>, %arg3: memref<8x32xf32, #tpu.memory_space<vmem>>, %arg4: memref<8x32xf32, #tpu.memory_space<vmem>>, %arg5: memref<1x128xf32, #tpu.memory_space<vmem>>) attributes {dimension_semantics = [#tpu.dimension_semantics<parallel>], iteration_bounds = array<i64: 1>, scalar_prefetch = 0 : i64, scratch_operands = 0 : i64, tpu.core_type = #tpu.core_type<tc>, window_params = [{transform_indices = @transform_0, window_bounds = array<i64: 8, 32>}, {transform_indices = @transform_1, window_bounds = array<i64: 8, 32>}, {transform_indices = @transform_2, window_bounds = array<i64: 8, 32>}, {transform_indices = @transform_3, window_bounds = array<i64: 8, 32>}, {transform_indices = @transform_4, window_bounds = array<i64: 1, 128>}]} {
    %c0 = arith.constant 0 : index
    %c0_0 = arith.constant 0 : index
    %0 = vector.load %arg1[%c0, %c0_0] : memref<8x32xf32, #tpu.memory_space<vmem>>, vector<8x32xf32>
    %c0_1 = arith.constant 0 : index
    %c0_2 = arith.constant 0 : index
    %1 = vector.load %arg2[%c0_1, %c0_2] : memref<8x32xf32, #tpu.memory_space<vmem>>, vector<8x32xf32>
    %c0_3 = arith.constant 0 : index
    %c0_4 = arith.constant 0 : index
    %2 = vector.load %arg3[%c0_3, %c0_4] : memref<8x32xf32, #tpu.memory_space<vmem>>, vector<8x32xf32>
    %c0_5 = arith.constant 0 : index
    %c0_6 = arith.constant 0 : index
    %3 = vector.load %arg4[%c0_5, %c0_6] : memref<8x32xf32, #tpu.memory_space<vmem>>, vector<8x32xf32>
    %4 = arith.subf %2, %1 : vector<8x32xf32>
    %5 = arith.mulf %0, %4 : vector<8x32xf32>
    %cst = arith.constant dense<0.000000e+00> : vector<8xf32>
    %6 = vector.multi_reduction <add>, %5, %cst [1] : vector<8x32xf32> to vector<8xf32>
    %7 = vector.shape_cast %6 : vector<8xf32> to vector<8x1xf32>
    %8 = arith.subf %3, %2 : vector<8x32xf32>
    %9 = arith.mulf %0, %8 : vector<8x32xf32>
    %cst_7 = arith.constant dense<0.000000e+00> : vector<8xf32>
    %10 = vector.multi_reduction <add>, %9, %cst_7 [1] : vector<8x32xf32> to vector<8xf32>
    %11 = vector.shape_cast %10 : vector<8xf32> to vector<8x1xf32>
    %cst_8 = arith.constant 1.000000e-01 : f32
    %12 = vector.broadcast %cst_8 : f32 to vector<8x1xf32>
    %13 = arith.addf %7, %12 : vector<8x1xf32>
    %cst_9 = arith.constant 0.000000e+00 : f32
    %14 = vector.broadcast %cst_9 : f32 to vector<8x1xf32>
    %15 = arith.maximumf %13, %14 : vector<8x1xf32>
    %cst_10 = arith.constant 1.000000e-01 : f32
    %16 = vector.broadcast %cst_10 : f32 to vector<8x1xf32>
    %17 = arith.addf %11, %16 : vector<8x1xf32>
    %cst_11 = arith.constant 0.000000e+00 : f32
    %18 = vector.broadcast %cst_11 : f32 to vector<8x1xf32>
    %19 = arith.maximumf %17, %18 : vector<8x1xf32>
    %20 = arith.addf %15, %19 : vector<8x1xf32>
    %c8_i32 = arith.constant 8 : i32
    %21 = arith.muli %arg0, %c8_i32 : i32
    %22 = tpu.iota {dimensions = array<i32: 0>} : vector<8x1xi32>
    %23 = vector.broadcast %21 : i32 to vector<8x1xi32>
    %24 = arith.addi %23, %22 : vector<8x1xi32>
    %c8_i32_12 = arith.constant 8 : i32
    %25 = vector.broadcast %c8_i32_12 : i32 to vector<8x1xi32>
    %26 = arith.cmpi slt, %24, %25 : vector<8x1xi32>
    %cst_13 = arith.constant 0.000000e+00 : f32
    %27 = vector.broadcast %cst_13 : f32 to vector<8x1xf32>
    %28 = arith.select %26, %20, %27 : vector<8x1xi1>, vector<8x1xf32>
    %29 = vector.shape_cast %28 : vector<8x1xf32> to vector<1x8x1xf32>
    %cst_14 = arith.constant dense<0.000000e+00> : vector<1xf32>
    %30 = vector.multi_reduction <add>, %29, %cst_14 [1, 2] : vector<1x8x1xf32> to vector<1xf32>
    %31 = vector.shape_cast %30 : vector<1xf32> to vector<1x1x1xf32>
    %32 = vector.extract %31[0, 0, 0] : f32 from vector<1x1x1xf32>
    %cst_15 = arith.constant 1.000000e+00 : f32
    %33 = vector.broadcast %cst_15 : f32 to vector<1x128xf32>
    %34 = vector.broadcast %32 : f32 to vector<1x128xf32>
    %35 = arith.mulf %34, %33 : vector<1x128xf32>
    %c0_16 = arith.constant 0 : index
    %c0_17 = arith.constant 0 : index
    %36 = vector.load %arg5[%c0_16, %c0_17] : memref<1x128xf32, #tpu.memory_space<vmem>>, vector<1x128xf32>
    tpu.vector_store %arg5[%c0_16, %c0_17], %35 {strides = array<i32>} : memref<1x128xf32, #tpu.memory_space<vmem>>, vector<1x128xf32>,
    return
  }
  func.func @transform_0(%arg0: i32) -> (i32, i32) {
    %c0_i32 = arith.constant 0 : i32
    %c0_i32_0 = arith.constant 0 : i32
    return %arg0, %c0_i32 : i32, i32
  }
  func.func @transform_1(%arg0: i32) -> (i32, i32) {
    %c0_i32 = arith.constant 0 : i32
    %c0_i32_0 = arith.constant 0 : i32
    return %arg0, %c0_i32 : i32, i32
  }
  func.func @transform_2(%arg0: i32) -> (i32, i32) {
    %c0_i32 = arith.constant 0 : i32
    %c0_i32_0 = arith.constant 0 : i32
    return %arg0, %c0_i32 : i32, i32
  }
  func.func @transform_3(%arg0: i32) -> (i32, i32) {
    %c0_i32 = arith.constant 0 : i32
    %c0_i32_0 = arith.constant 0 : i32
    return %arg0, %c0_i32 : i32, i32
  }
  func.func @transform_4(%arg0: i32) -> (i32, i32) {
    %c0_i32 = arith.constant 0 : i32
    %c0_i32_0 = arith.constant 0 : i32
    return %arg0, %c0_i32 : i32, i32
  }
}

</mosaic_0001>

<llo_original>
// kernel: ordinal_triplet_loss_cosine.1
$region0: #{ordinal_triplet_loss_cosine.1}
  #allocation0 [shape = 'u32[]', space=smem, size = 0x4, offset = 0x4, fixed_abs, tag = 'smem constant byte address 0x4 - core index']
  #allocation1 [shape = 'u32[144,128]{1,0:T(1,128)}', space=vmem, size = 0x12000, scoped, tag = 'internal scratch']
  %s0 = inlined_call_operand.hbm [shape: f32[8,32], index: 0, kind: input, shape index: {}]
  %s1 = inlined_call_operand.hbm [shape: f32[8,32], index: 1, kind: input, shape index: {}]
  %s2 = inlined_call_operand.hbm [shape: f32[8,32], index: 2, kind: input, shape index: {}]
  %s3 = inlined_call_operand.vmem [shape: f32[8,32], index: 3, kind: input, shape index: {}]
  %s4 = inlined_call_operand.vmem [shape: f32[1,128], index: 4, kind: output, shape index: {}]
  %s5 = sld [smem:[#allocation0]]
  $region38: #{ordinal_triplet_loss_cosine.1} parent=0
    _
  %s7 = ssub.s32 1, %s5
  %s8 = scalar_select 0, %s7, %s5
  $region1: #{ordinal_triplet_loss_cosine.1} parent=0
    #allocation2 [shape = 'u8[4096]{0}', space=vmem, size = 0x1000, scoped, tag = 'input window, operand 0, single buffered']
    #allocation3 [shape = 's32[1]{0}', space=sflag, size = 0x4, scoped, tag = 'scoped memory for ordinal_triplet_loss_cosine.1']
    #allocation4 [shape = 'u8[4096]{0}', space=vmem, size = 0x1000, scoped, tag = 'input window, operand 1, single buffered']
    #allocation5 [shape = 's32[1]{0}', space=sflag, size = 0x4, scoped, tag = 'scoped memory for ordinal_triplet_loss_cosine.1']
    #allocation6 [shape = 'u8[4096]{0}', space=vmem, size = 0x1000, scoped, tag = 'input window, operand 2, single buffered']
    %9 = vsyncpa [#allocation3], 0
    %10 = vsyncpa [#allocation5], 0
    // Predicated region
    $region2: #{ordinal_triplet_loss_cosine.1} parent=1 // pred_check
      _
    $region3: #{ordinal_triplet_loss_cosine.1} parent=1 // pred_check_branch
      %12 = sbr.rel (0) target = $region5
    $region4: #{ordinal_triplet_loss_cosine.1} parent=1 // pred_region
      %s14 = ssub.s32 128, 128
      %15 = vsyncadd [#allocation3], %s14
      %s17 = sshll.u32 [#allocation2], 4
      %s18 = int_to_ptr.vmem [resolvable:$true] %s17
      %20 = dma.hbm_to_vmem [thread:$0]  %s0, 128, %s18, [#allocation3]
    $region5: #{ordinal_triplet_loss_cosine.1} parent=1 // pred_fallthru
      _
    // Predicated region
    $region6: #{ordinal_triplet_loss_cosine.1} parent=1 // pred_check
      _
    $region7: #{ordinal_triplet_loss_cosine.1} parent=1 // pred_check_branch
      %22 = sbr.rel (0) target = $region9
    $region8: #{ordinal_triplet_loss_cosine.1} parent=1 // pred_region
      %s24 = ssub.s32 128, 128
      %25 = vsyncadd [#allocation5], %s24
      %s27 = sshll.u32 [#allocation4], 4
      %s28 = int_to_ptr.vmem [resolvable:$true] %s27
      %30 = dma.hbm_to_vmem [thread:$0]  %s1, 128, %s28, [#allocation5]
    $region9: #{ordinal_triplet_loss_cosine.1} parent=1 // pred_fallthru
      _
    // Predicated region
    $region10: #{ordinal_triplet_loss_cosine.1} parent=1 // pred_check
      _
    $region11: #{ordinal_triplet_loss_cosine.1} parent=1 // pred_check_branch
      %32 = sbr.rel (0) target = $region13
    $region12: #{ordinal_triplet_loss_cosine.1} parent=1 // pred_region
      %s34 = ssub.s32 128, 128
      %35 = vsyncadd [#allocation5], %s34
      %s37 = sshll.u32 [#allocation6], 4
      %s38 = int_to_ptr.vmem [resolvable:$true] %s37
      %40 = dma.hbm_to_vmem [thread:$0]  %s2, 128, %s38, [#allocation5]
    $region13: #{ordinal_triplet_loss_cosine.1} parent=1 // pred_fallthru
      _
    // Predicated region
    $region14: #{ordinal_triplet_loss_cosine.1} parent=1 // pred_check
      _
    $region15: #{ordinal_triplet_loss_cosine.1} parent=1 // pred_check_branch
      %42 = sbr.rel (0) target = $region17
    $region16: #{ordinal_triplet_loss_cosine.1} parent=1 // pred_region
      _
    $region17: #{ordinal_triplet_loss_cosine.1} parent=1 // pred_fallthru
      _
    // Predicated region
    $region18: #{ordinal_triplet_loss_cosine.1} parent=1 // pred_check
      _
    $region19: #{ordinal_triplet_loss_cosine.1} parent=1 // pred_check_branch
      %44 = sbr.rel (0) target = $region21
    $region20: #{ordinal_triplet_loss_cosine.1} parent=1 // pred_region
      %45 = dma.done [#allocation3], 128
    $region21: #{ordinal_triplet_loss_cosine.1} parent=1 // pred_fallthru
      _
    // Predicated region
    $region22: #{ordinal_triplet_loss_cosine.1} parent=1 // pred_check
      _
    $region23: #{ordinal_triplet_loss_cosine.1} parent=1 // pred_check_branch
      %47 = sbr.rel (0) target = $region25
    $region24: #{ordinal_triplet_loss_cosine.1} parent=1 // pred_region
      %48 = dma.done [#allocation5], 128
    $region25: #{ordinal_triplet_loss_cosine.1} parent=1 // pred_fallthru
      _
    // Predicated region
    $region26: #{ordinal_triplet_loss_cosine.1} parent=1 // pred_check
      _
    $region27: #{ordinal_triplet_loss_cosine.1} parent=1 // pred_check_branch
      %50 = sbr.rel (0) target = $region29
    $region28: #{ordinal_triplet_loss_cosine.1} parent=1 // pred_region
      %51 = dma.done [#allocation5], 128
    $region29: #{ordinal_triplet_loss_cosine.1} parent=1 // pred_fallthru
      _
    %v52 = vld [vmem:[#allocation2] sm:$0xff]
    %v53 = vld [vmem:[#allocation4] sm:$0xff]
    %v54 = vld [vmem:[#allocation6] sm:$0xff]
    %v55 = vld [vmem:[%s3] sm:$0xff]
    %v56 = vsub.f32 %v54, %v53
    %v57 = vmul.f32 %v52, %v56
    %vm58 = vcmask 261120
    %v59 = vsel %vm58, %v57, 0.0
    %60 = vadd.xlane.f32.xlu0 %v59
    %v61 = vpop.xlane.xlu0 %60
    %v62 = vsub.f32 %v55, %v54
    %v63 = vmul.f32 %v52, %v62
    %v64 = vsel %vm58, %v63, 0.0
    %65 = vadd.xlane.f32.xlu0 %v64
    %v66 = vpop.xlane.xlu0 %65
    %v67 = vadd.f32 %v61, 0.1
    %v68 = vmax.f32 %v67, 0.0
    %v69 = vadd.f32 %v66, 0.1
    %v70 = vmax.f32 %v69, 0.0
    %v71 = vadd.f32 %v68, %v70
    %s72 = smul.u32 0, 8
    %v73 = vlaneseq
    %v74 = vshrl.u32 %v73, 7
    %v75 = vstv %s72
    %v76 = vadd.s32 %v75, %v74
    %vm77 = vcmp.lt.s32.totalorder %v76, 8
    %v78 = vsel %vm77, %v71, 0.0
    %vm79 = vcmask 7168
    %v80 = vsel %vm79, %v78, 0.0
    %81 = vadd.xlane.f32.xlu0 %v80
    %v82 = vpop.xlane.xlu0 %81
    %v83 = vrot.slane %v82, 4
    %v84 = vadd.f32 %v82, %v83
    %v85 = vrot.slane %v84, 2
    %v86 = vadd.f32 %v84, %v85
    %v87 = vrot.slane %v86, 1
    %v88 = vadd.f32 %v86, %v87
    %s89 = vtos %v88
    %v90 = vstv %s89
    %91 = vst [vmem:[%s4] sm:$0x1] %v90
    // Predicated region
    $region30: #{ordinal_triplet_loss_cosine.1} parent=1 // pred_check
      _
    $region31: #{ordinal_triplet_loss_cosine.1} parent=1 // pred_check_branch
      %93 = sbr.rel (0) target = $region33
    $region32: #{ordinal_triplet_loss_cosine.1} parent=1 // pred_region
      _
    $region33: #{ordinal_triplet_loss_cosine.1} parent=1 // pred_fallthru
      _
    // Predicated region
    $region34: #{ordinal_triplet_loss_cosine.1} parent=1 // pred_check
      _
    $region35: #{ordinal_triplet_loss_cosine.1} parent=1 // pred_check_branch
      %95 = sbr.rel (0) target = $region37
    $region36: #{ordinal_triplet_loss_cosine.1} parent=1 // pred_region
      _
    $region37: #{ordinal_triplet_loss_cosine.1} parent=1 // pred_fallthru
      _
    %96 = vsyncpa [#allocation3], 1
    %97 = vsyncpa [#allocation5], 1

</llo_original>
